<compile_context>
chip_gen: v5e
topology: v5e:2x2
jax: 0.10.0
libtpu: 0.0.40
codegen_flags: <defaults>
</compile_context>

<pallas_src>
import math
import numpy as np
import jax
import jax.numpy as jnp
from jax import lax
from jax.experimental import pallas as pl
from jax.experimental.pallas import tpu as pltpu


def neuro_attn_kernel(q_ref, kT_ref, v_ref, o_ref):
    # q_ref : (S, H)     shared query embeddings
    # kT_ref: (H, B*L)   keys, pre-flattened + transposed in the wrapper
    # v_ref : (B, L)     values
    # o_ref : (S, B)     output in compute layout (transposed in the wrapper)
    S, H = q_ref.shape
    B, L = v_ref.shape

    q = q_ref[...]                                    # (S, H) f32
    kT = kT_ref[...]                                  # (H, B*L) f32
    v = v_ref[...]                                    # (B, L)  f32

    # One canonical (M,K)x(K,N) MXU contraction:
    #   logits[s, b*L + l] = sum_h q[s, h] * keys[b, l, h]
    logits = lax.dot_general(
        q, kT, (((1,), (0,)), ((), ())),
        preferred_element_type=jnp.float32,
        precision=lax.Precision.HIGHEST)              # (S, B*L)

    # Per-batch softmax over static 128-lane-aligned slices, fused with the
    # values weighted sum: out[s, b] = (sum_l p[s,l]*v[b,l]) / (sum_l p[s,l])
    for b in range(B):                                # B tiny & static -> unrolled
        lb = logits[:, b * L:(b + 1) * L]             # (S, L) static, lane-aligned view
        m = jnp.max(lb, axis=-1, keepdims=True)       # (S, 1)
        p = jnp.exp(lb - m)                           # (S, L)  EUP
        denom = jnp.sum(p, axis=-1, keepdims=True)    # (S, 1)  lane reduce
        vb = v[b:b + 1, :]                            # (1, L)
        numer = jnp.sum(p * vb, axis=-1, keepdims=True)  # (S, 1)  VPU mul + reduce
        inv = pl.reciprocal(denom, approx=False)      # (S, 1)  exact recip on EUP
        o_ref[:, b:b + 1] = numer * inv               # direct column store


def neuro_informed_attention(query_emb, values, keys):
    """query_emb: (S, H), values: (B, L), keys: (B, L, H)  ->  (B, S)."""
    S, H = query_emb.shape
    B, L = values.shape
    assert keys.shape == (B, L, H)

    # Wrapper-side layout prep: canonical (K, N) RHS for the kernel matmul.
    keys_T = keys.reshape(B * L, H).T                 # (H, B*L) — cheap XLA op

    cost = pl.CostEstimate(
        flops=2 * B * S * L * H + 6 * B * S * L,
        transcendentals=B * S * L,
        bytes_accessed=4 * (S * H + B * L * H + B * L + B * S),
    )

    out_sb = pl.pallas_call(
        neuro_attn_kernel,
        out_shape=jax.ShapeDtypeStruct((S, B), jnp.float32),
        in_specs=[
            pl.BlockSpec((S, H), lambda: (0, 0)),          # query embeddings
            pl.BlockSpec((H, B * L), lambda: (0, 0)),      # keys (flattened, transposed)
            pl.BlockSpec((B, L), lambda: (0, 0)),          # values
        ],
        out_specs=pl.BlockSpec((S, B), lambda: (0, 0)),
        cost_estimate=cost,
    )(query_emb, keys_T, values)

    return out_sb.T                                    # (B, S) — 128-byte XLA transpose


def reference(query_emb, values, keys):
    # Pure-JAX reference mirroring the PyTorch forward (f32, highest precision).
    logits = jnp.einsum("sh,blh->bsl", query_emb, keys,
                        precision=lax.Precision.HIGHEST)   # (B, S, L)
    w = jax.nn.softmax(logits, axis=-1)                    # (B, S, L)
    return jnp.einsum("bl,bsl->bs", values, w,
                      precision=lax.Precision.HIGHEST)     # (B, S)


if __name__ == "__main__":
    # Small shapes consistent with the module: B=2, S(size)=16, L(seq)=128, H(rank)=128
    B, S, L, H = 2, 16, 128, 128

    key = jax.random.PRNGKey(0)
    k_q, k_v, k_k = jax.random.split(key, 3)

    # Deterministic xavier_uniform-like init for query_embeddings (1, S, H) -> stored (S, H)
    bound = math.sqrt(6.0 / (S + H))
    query_emb = jax.random.uniform(
        k_q, (S, H), dtype=jnp.float32, minval=-bound, maxval=bound)

    values = jax.random.normal(k_v, (B, L), dtype=jnp.float32)
    keys = jax.random.normal(k_k, (B, L, H), dtype=jnp.float32)

    out = neuro_informed_attention(query_emb, values, keys)
    out = jax.block_until_ready(out)

    ref = reference(query_emb, values, keys)
    np.testing.assert_allclose(np.asarray(out), np.asarray(ref),
                               rtol=1e-5, atol=1e-5)
    assert out.shape == (B, S)
    print("KERNEL_OK")
</pallas_src>

<mosaic_0001>
module attributes {stable_mosaic.version = 11 : i64} {
  func.func @neuro_attn_kernel(%arg0: memref<16x128xf32, #tpu.memory_space<vmem>>, %arg1: memref<128x256xf32, #tpu.memory_space<vmem>>, %arg2: memref<2x128xf32, #tpu.memory_space<vmem>>, %arg3: memref<16x2xf32, #tpu.memory_space<vmem>>) attributes {dimension_semantics = [], scalar_prefetch = 0 : i64, scratch_operands = 0 : i64, tpu.core_type = #tpu.core_type<tc>} {
    %c0 = arith.constant 0 : index
    %c0_0 = arith.constant 0 : index
    %0 = vector.load %arg0[%c0, %c0_0] : memref<16x128xf32, #tpu.memory_space<vmem>>, vector<16x128xf32>
    %c0_1 = arith.constant 0 : index
    %c0_2 = arith.constant 0 : index
    %1 = vector.load %arg1[%c0_1, %c0_2] : memref<128x256xf32, #tpu.memory_space<vmem>>, vector<128x256xf32>
    %c0_3 = arith.constant 0 : index
    %c0_4 = arith.constant 0 : index
    %2 = vector.load %arg2[%c0_3, %c0_4] : memref<2x128xf32, #tpu.memory_space<vmem>>, vector<2x128xf32>
    %cst = arith.constant dense<0.000000e+00> : vector<16x256xf32>
    %3 = tpu.matmul %0, %1, %cst {dimension_numbers = #tpu.dot_dimension_numbers<[1], [0], [0], [1], [0, 0, 1, 1], [], []>, precision = #tpu.contract_precision<fp32>} : vector<16x128xf32>, vector<128x256xf32>, vector<16x256xf32> -> vector<16x256xf32>
    %4 = vector.extract_strided_slice %3 {offsets = [0, 0], sizes = [16, 128], strides = [1, 1]} : vector<16x256xf32> to vector<16x128xf32>
    %cst_5 = arith.constant dense<0xFF800000> : vector<16xf32>
    %5 = vector.multi_reduction <maximumf>, %4, %cst_5 [1] : vector<16x128xf32> to vector<16xf32>
    %6 = vector.shape_cast %5 : vector<16xf32> to vector<16x1xf32>
    %7 = vector.broadcast %6 : vector<16x1xf32> to vector<16x128xf32>
    %8 = arith.subf %4, %7 : vector<16x128xf32>
    %9 = math.exp %8 : vector<16x128xf32>
    %cst_6 = arith.constant dense<0.000000e+00> : vector<16xf32>
    %10 = vector.multi_reduction <add>, %9, %cst_6 [1] : vector<16x128xf32> to vector<16xf32>
    %11 = vector.shape_cast %10 : vector<16xf32> to vector<16x1xf32>
    %12 = vector.extract_strided_slice %2 {offsets = [0, 0], sizes = [1, 128], strides = [1, 1]} : vector<2x128xf32> to vector<1x128xf32>
    %13 = vector.broadcast %12 : vector<1x128xf32> to vector<16x128xf32>
    %14 = arith.mulf %9, %13 : vector<16x128xf32>
    %cst_7 = arith.constant dense<0.000000e+00> : vector<16xf32>
    %15 = vector.multi_reduction <add>, %14, %cst_7 [1] : vector<16x128xf32> to vector<16xf32>
    %16 = vector.shape_cast %15 : vector<16xf32> to vector<16x1xf32>
    %17 = tpu.reciprocal %11 : vector<16x1xf32> -> vector<16x1xf32>
    %18 = arith.mulf %16, %17 : vector<16x1xf32>
    %c0_8 = arith.constant 0 : index
    %c0_9 = arith.constant 0 : index
    %19 = vector.load %arg3[%c0_8, %c0_9] : memref<16x2xf32, #tpu.memory_space<vmem>>, vector<16x1xf32>
    tpu.vector_store %arg3[%c0_8, %c0_9], %18 {strides = array<i32>} : memref<16x2xf32, #tpu.memory_space<vmem>>, vector<16x1xf32>,
    %20 = vector.extract_strided_slice %3 {offsets = [0, 128], sizes = [16, 128], strides = [1, 1]} : vector<16x256xf32> to vector<16x128xf32>
    %cst_10 = arith.constant dense<0xFF800000> : vector<16xf32>
    %21 = vector.multi_reduction <maximumf>, %20, %cst_10 [1] : vector<16x128xf32> to vector<16xf32>
    %22 = vector.shape_cast %21 : vector<16xf32> to vector<16x1xf32>
    %23 = vector.broadcast %22 : vector<16x1xf32> to vector<16x128xf32>
    %24 = arith.subf %20, %23 : vector<16x128xf32>
    %25 = math.exp %24 : vector<16x128xf32>
    %cst_11 = arith.constant dense<0.000000e+00> : vector<16xf32>
    %26 = vector.multi_reduction <add>, %25, %cst_11 [1] : vector<16x128xf32> to vector<16xf32>
    %27 = vector.shape_cast %26 : vector<16xf32> to vector<16x1xf32>
    %28 = vector.extract_strided_slice %2 {offsets = [1, 0], sizes = [1, 128], strides = [1, 1]} : vector<2x128xf32> to vector<1x128xf32>
    %29 = vector.broadcast %28 : vector<1x128xf32> to vector<16x128xf32>
    %30 = arith.mulf %25, %29 : vector<16x128xf32>
    %cst_12 = arith.constant dense<0.000000e+00> : vector<16xf32>
    %31 = vector.multi_reduction <add>, %30, %cst_12 [1] : vector<16x128xf32> to vector<16xf32>
    %32 = vector.shape_cast %31 : vector<16xf32> to vector<16x1xf32>
    %33 = tpu.reciprocal %27 : vector<16x1xf32> -> vector<16x1xf32>
    %34 = arith.mulf %32, %33 : vector<16x1xf32>
    %c0_13 = arith.constant 0 : index
    %c1 = arith.constant 1 : index
    %35 = vector.load %arg3[%c0_13, %c1] : memref<16x2xf32, #tpu.memory_space<vmem>>, vector<16x1xf32>
    tpu.vector_store %arg3[%c0_13, %c1], %34 {strides = array<i32>} : memref<16x2xf32, #tpu.memory_space<vmem>>, vector<16x1xf32>,
    return
  }
}

</mosaic_0001>

<llo_original>
// kernel: tpu_custom_call.1
$region0: #{tpu_custom_call.1}
  #allocation0 [shape = 'u32[]', space=smem, size = 0x4, offset = 0x4, fixed_abs, tag = 'smem constant byte address 0x4 - core index']
  #allocation1 [shape = 'u32[72,128]{1,0:T(1,128)}', space=vmem, size = 0x9000, scoped, tag = 'internal scratch']
  %s0 = inlined_call_operand.hbm [shape: f32[16,128], index: 0, kind: input, shape index: {}]
  %s1 = inlined_call_operand.hbm [shape: f32[128,256], index: 1, kind: input, shape index: {}]
  %s2 = inlined_call_operand.hbm [shape: f32[2,128], index: 2, kind: input, shape index: {}]
  %s3 = inlined_call_operand.vmem [shape: f32[16,2], index: 3, kind: output, shape index: {}]
  %s4 = sld [smem:[#allocation0]]
  $region34: #{tpu_custom_call.1} parent=0
    _
  %s6 = ssub.s32 1, %s4
  %s7 = scalar_select 0, %s6, %s4
  $region1: #{tpu_custom_call.1} parent=0
    #allocation2 [shape = 'u8[8192]{0}', space=vmem, size = 0x2000, scoped, tag = 'input window, operand 0, single buffered']
    #allocation3 [shape = 's32[1]{0}', space=sflag, size = 0x4, scoped, tag = 'scoped memory for tpu_custom_call.1']
    #allocation4 [shape = 'u8[131072]{0}', space=vmem, size = 0x20000, scoped, tag = 'input window, operand 1, single buffered']
    #allocation5 [shape = 's32[1]{0}', space=sflag, size = 0x4, scoped, tag = 'scoped memory for tpu_custom_call.1']
    #allocation6 [shape = 'u8[1024]{0}', space=vmem, size = 0x400, scoped, tag = 'input window, operand 2, single buffered']
    %8 = vsyncpa [#allocation3], 0
    %9 = vsyncpa [#allocation5], 0
    // Predicated region
    $region2: #{tpu_custom_call.1} parent=1 // pred_check
      _
    $region3: #{tpu_custom_call.1} parent=1 // pred_check_branch
      %11 = sbr.rel (0) target = $region5
    $region4: #{tpu_custom_call.1} parent=1 // pred_region
      %13 = vsyncadd [#allocation3], 0
      %s14 = sshll.u32 %s0, 4
      %s15 = int_to_ptr.hbm [resolvable:$true] %s14
      %s16 = sshll.u32 [#allocation2], 4
      %s17 = int_to_ptr.vmem [resolvable:$true] %s16
      %22 = dma.hbm_to_vmem [thread:$0]  %s15, 256, %s17, [#allocation3], 128, 128, 8
    $region5: #{tpu_custom_call.1} parent=1 // pred_fallthru
      _
    // Predicated region
    $region6: #{tpu_custom_call.1} parent=1 // pred_check
      _
    $region7: #{tpu_custom_call.1} parent=1 // pred_check_branch
      %24 = sbr.rel (0) target = $region9
    $region8: #{tpu_custom_call.1} parent=1 // pred_region
      %26 = vsyncadd [#allocation5], 0
      %s27 = sshll.u32 %s1, 4
      %s28 = int_to_ptr.hbm [resolvable:$true] %s27
      %s29 = sshll.u32 [#allocation4], 4
      %s30 = int_to_ptr.vmem [resolvable:$true] %s29
      %35 = dma.hbm_to_vmem [thread:$0]  %s28, 4096, %s30, [#allocation5], 256, 256, 16
    $region9: #{tpu_custom_call.1} parent=1 // pred_fallthru
      _
    // Predicated region
    $region10: #{tpu_custom_call.1} parent=1 // pred_check
      _
    $region11: #{tpu_custom_call.1} parent=1 // pred_check_branch
      %37 = sbr.rel (0) target = $region13
    $region12: #{tpu_custom_call.1} parent=1 // pred_region
      %39 = vsyncadd [#allocation5], 0
      %s41 = sshll.u32 %s2, 4
      %s42 = int_to_ptr.hbm [resolvable:$true] %s41
      %s43 = sshll.u32 [#allocation6], 4
      %s44 = int_to_ptr.vmem [resolvable:$true] %s43
      %46 = dma.hbm_to_vmem [thread:$0]  %s42, 32, %s44, [#allocation5]
    $region13: #{tpu_custom_call.1} parent=1 // pred_fallthru
      _
    // Predicated region
    $region14: #{tpu_custom_call.1} parent=1 // pred_check
      _
    $region15: #{tpu_custom_call.1} parent=1 // pred_check_branch
      %48 = sbr.rel (0) target = $region17
    $region16: #{tpu_custom_call.1} parent=1 // pred_region
      %50 = dma.done [#allocation3], 256
    $region17: #{tpu_custom_call.1} parent=1 // pred_fallthru
      _
    // Predicated region
    $region18: #{tpu_custom_call.1} parent=1 // pred_check
      _
    $region19: #{tpu_custom_call.1} parent=1 // pred_check_branch
      %52 = sbr.rel (0) target = $region21
    $region20: #{tpu_custom_call.1} parent=1 // pred_region
      %54 = dma.done [#allocation5], 4096
    $region21: #{tpu_custom_call.1} parent=1 // pred_fallthru
      _
    // Predicated region
    $region22: #{tpu_custom_call.1} parent=1 // pred_check
      _
    $region23: #{tpu_custom_call.1} parent=1 // pred_check_branch
      %56 = sbr.rel (0) target = $region25
    $region24: #{tpu_custom_call.1} parent=1 // pred_region
      %58 = dma.done [#allocation5], 32
    $region25: #{tpu_custom_call.1} parent=1 // pred_fallthru
      _
    %v59 = vld [vmem:[#allocation2] sm:$0xff]
    %v60 = vld [vmem:[#allocation2 + $0x8] sm:$0xff]
    %v61 = vld [vmem:[#allocation4] sm:$0xff]
    %v62 = vld [vmem:[#allocation4 + $0x8] sm:$0xff]
    %v63 = vld [vmem:[#allocation4 + $0x10] sm:$0xff]
    %v64 = vld [vmem:[#allocation4 + $0x18] sm:$0xff]
    %v65 = vld [vmem:[#allocation4 + $0x20] sm:$0xff]
    %v66 = vld [vmem:[#allocation4 + $0x28] sm:$0xff]
    %v67 = vld [vmem:[#allocation4 + $0x30] sm:$0xff]
    %v68 = vld [vmem:[#allocation4 + $0x38] sm:$0xff]
    %v69 = vld [vmem:[#allocation4 + $0x40] sm:$0xff]
    %v70 = vld [vmem:[#allocation4 + $0x48] sm:$0xff]
    %v71 = vld [vmem:[#allocation4 + $0x50] sm:$0xff]
    %v72 = vld [vmem:[#allocation4 + $0x58] sm:$0xff]
    %v73 = vld [vmem:[#allocation4 + $0x60] sm:$0xff]
    %v74 = vld [vmem:[#allocation4 + $0x68] sm:$0xff]
    %v75 = vld [vmem:[#allocation4 + $0x70] sm:$0xff]
    %v76 = vld [vmem:[#allocation4 + $0x78] sm:$0xff]
    %v77 = vld [vmem:[#allocation4 + $0x80] sm:$0xff]
    %v78 = vld [vmem:[#allocation4 + $0x88] sm:$0xff]
    %v79 = vld [vmem:[#allocation4 + $0x90] sm:$0xff]
    %v80 = vld [vmem:[#allocation4 + $0x98] sm:$0xff]
    %v81 = vld [vmem:[#allocation4 + $0xa0] sm:$0xff]
    %v82 = vld [vmem:[#allocation4 + $0xa8] sm:$0xff]
    %v83 = vld [vmem:[#allocation4 + $0xb0] sm:$0xff]
    %v84 = vld [vmem:[#allocation4 + $0xb8] sm:$0xff]
    %v85 = vld [vmem:[#allocation4 + $0xc0] sm:$0xff]
    %v86 = vld [vmem:[#allocation4 + $0xc8] sm:$0xff]
    %v87 = vld [vmem:[#allocation4 + $0xd0] sm:$0xff]
    %v88 = vld [vmem:[#allocation4 + $0xd8] sm:$0xff]
    %v89 = vld [vmem:[#allocation4 + $0xe0] sm:$0xff]
    %v90 = vld [vmem:[#allocation4 + $0xe8] sm:$0xff]
    %v91 = vld [vmem:[#allocation4 + $0xf0] sm:$0xff]
    %v92 = vld [vmem:[#allocation4 + $0xf8] sm:$0xff]
    %v93 = vld [vmem:[#allocation6] sm:$0x3]
    %v94 = vand.u32 %v91, 4294901760
    %95 = vmatpush.msra.mxu0 %v94
    %v96 = vand.u32 %v89, 4294901760
    %97 = vmatpush.msra.mxu0 %v96
    %v98 = vand.u32 %v87, 4294901760
    %99 = vmatpush.msra.mxu0 %v98
    %v100 = vand.u32 %v85, 4294901760
    %101 = vmatpush.msra.mxu0 %v100
    %v102 = vand.u32 %v83, 4294901760
    %103 = vmatpush.msra.mxu0 %v102
    %v104 = vand.u32 %v81, 4294901760
    %105 = vmatpush.msra.mxu0 %v104
    %v106 = vand.u32 %v79, 4294901760
    %107 = vmatpush.msra.mxu0 %v106
    %v108 = vand.u32 %v77, 4294901760
    %109 = vmatpush.msra.mxu0 %v108
    %v110 = vand.u32 %v75, 4294901760
    %111 = vmatpush.msra.mxu0 %v110
    %v112 = vand.u32 %v73, 4294901760
    %113 = vmatpush.msra.mxu0 %v112
    %v114 = vand.u32 %v71, 4294901760
    %115 = vmatpush.msra.mxu0 %v114
    %v116 = vand.u32 %v69, 4294901760
    %117 = vmatpush.msra.mxu0 %v116
    %v118 = vand.u32 %v67, 4294901760
    %119 = vmatpush.msra.mxu0 %v118
    %v120 = vand.u32 %v65, 4294901760
    %121 = vmatpush.msra.mxu0 %v120
    %v122 = vand.u32 %v63, 4294901760
    %123 = vmatpush.msra.mxu0 %v122
    %v124 = vand.u32 %v61, 4294901760
    %125 = vmatpush.msra.mxu0 %v124
    %v126 = vand.u32 %v59, 4294901760
    %v127 = vsub.f32 %v59, %v126
    %v128 = vand.u32 %v127, 4294901760
    %v129 = vsub.f32 %v127, %v128
    %v130 = vand.u32 %v129, 4294901760
    %131 = vmatmul.f32.gmra.mxu0 %v130
    %v132 = vpop.f32.mrf.mxu0
    %v133 = vadd.f32 0.0, %v132
    %v134 = vand.u32 %v60, 4294901760
    %v135 = vsub.f32 %v60, %v134
    %v136 = vand.u32 %v135, 4294901760
    %v137 = vsub.f32 %v135, %v136
    %v138 = vand.u32 %v137, 4294901760
    %139 = vmatmul.f32.gmra.mxu0 %v138
    %v140 = vpop.f32.mrf.mxu0
    %v141 = vadd.f32 0.0, %v140
    %142 = vdwg.mxu0
    %v143 = vand.u32 %v91, 4294901760
    %v144 = vsub.f32 %v91, %v143
    %v145 = vand.u32 %v144, 4294901760
    %v146 = vsub.f32 %v144, %v145
    %v147 = vand.u32 %v146, 4294901760
    %148 = vmatpush.msra.mxu0 %v147
    %v149 = vand.u32 %v89, 4294901760
    %v150 = vsub.f32 %v89, %v149
    %v151 = vand.u32 %v150, 4294901760
    %v152 = vsub.f32 %v150, %v151
    %v153 = vand.u32 %v152, 4294901760
    %154 = vmatpush.msra.mxu0 %v153
    %v155 = vand.u32 %v87, 4294901760
    %v156 = vsub.f32 %v87, %v155
    %v157 = vand.u32 %v156, 4294901760
    %v158 = vsub.f32 %v156, %v157
    %v159 = vand.u32 %v158, 4294901760
    %160 = vmatpush.msra.mxu0 %v159
    %v161 = vand.u32 %v85, 4294901760
    %v162 = vsub.f32 %v85, %v161
    %v163 = vand.u32 %v162, 4294901760
    %v164 = vsub.f32 %v162, %v163
    %v165 = vand.u32 %v164, 4294901760
    %166 = vmatpush.msra.mxu0 %v165
    %v167 = vand.u32 %v83, 4294901760
    %v168 = vsub.f32 %v83, %v167
    %v169 = vand.u32 %v168, 4294901760
    %v170 = vsub.f32 %v168, %v169
    %v171 = vand.u32 %v170, 4294901760
    %172 = vmatpush.msra.mxu0 %v171
    %v173 = vand.u32 %v81, 4294901760
    %v174 = vsub.f32 %v81, %v173
    %v175 = vand.u32 %v174, 4294901760
    %v176 = vsub.f32 %v174, %v175
    %v177 = vand.u32 %v176, 4294901760
    %178 = vmatpush.msra.mxu0 %v177
    %v179 = vand.u32 %v79, 4294901760
    %v180 = vsub.f32 %v79, %v179
    %v181 = vand.u32 %v180, 4294901760
    %v182 = vsub.f32 %v180, %v181
    %v183 = vand.u32 %v182, 4294901760
    %184 = vmatpush.msra.mxu0 %v183
    %v185 = vand.u32 %v77, 4294901760
    %v186 = vsub.f32 %v77, %v185
    %v187 = vand.u32 %v186, 4294901760
    %v188 = vsub.f32 %v186, %v187
    %v189 = vand.u32 %v188, 4294901760
    %190 = vmatpush.msra.mxu0 %v189
    %v191 = vand.u32 %v75, 4294901760
    %v192 = vsub.f32 %v75, %v191
    %v193 = vand.u32 %v192, 4294901760
    %v194 = vsub.f32 %v192, %v193
    %v195 = vand.u32 %v194, 4294901760
    %196 = vmatpush.msra.mxu0 %v195
    %v197 = vand.u32 %v73, 4294901760
    %v198 = vsub.f32 %v73, %v197
    %v199 = vand.u32 %v198, 4294901760
    %v200 = vsub.f32 %v198, %v199
    %v201 = vand.u32 %v200, 4294901760
    %202 = vmatpush.msra.mxu0 %v201
    %v203 = vand.u32 %v71, 4294901760
    %v204 = vsub.f32 %v71, %v203
    %v205 = vand.u32 %v204, 4294901760
    %v206 = vsub.f32 %v204, %v205
    %v207 = vand.u32 %v206, 4294901760
    %208 = vmatpush.msra.mxu0 %v207
    %v209 = vand.u32 %v69, 4294901760
    %v210 = vsub.f32 %v69, %v209
    %v211 = vand.u32 %v210, 4294901760
    %v212 = vsub.f32 %v210, %v211
    %v213 = vand.u32 %v212, 4294901760
    %214 = vmatpush.msra.mxu0 %v213
    %v215 = vand.u32 %v67, 4294901760
    %v216 = vsub.f32 %v67, %v215
    %v217 = vand.u32 %v216, 4294901760
    %v218 = vsub.f32 %v216, %v217
    %v219 = vand.u32 %v218, 4294901760
    %220 = vmatpush.msra.mxu0 %v219
    %v221 = vand.u32 %v65, 4294901760
    %v222 = vsub.f32 %v65, %v221
    %v223 = vand.u32 %v222, 4294901760
    %v224 = vsub.f32 %v222, %v223
    %v225 = vand.u32 %v224, 4294901760
    %226 = vmatpush.msra.mxu0 %v225
    %v227 = vand.u32 %v63, 4294901760
    %v228 = vsub.f32 %v63, %v227
    %v229 = vand.u32 %v228, 4294901760
    %v230 = vsub.f32 %v228, %v229
    %v231 = vand.u32 %v230, 4294901760
    %232 = vmatpush.msra.mxu0 %v231
    %v233 = vand.u32 %v61, 4294901760
    %v234 = vsub.f32 %v61, %v233
    %v235 = vand.u32 %v234, 4294901760
    %v236 = vsub.f32 %v234, %v235
    %v237 = vand.u32 %v236, 4294901760
    %238 = vmatpush.msra.mxu0 %v237
    %v239 = vand.u32 %v59, 4294901760
    %240 = vmatmul.f32.gmra.mxu0 %v239
    %v241 = vpop.f32.mrf.mxu0
    %v242 = vadd.f32 %v133, %v241
    %v243 = vand.u32 %v60, 4294901760
    %244 = vmatmul.f32.gmra.mxu0 %v243
    %v245 = vpop.f32.mrf.mxu0
    %v246 = vadd.f32 %v141, %v245
    %247 = vdwg.mxu0
    %v248 = vand.u32 %v91, 4294901760
    %v249 = vsub.f32 %v91, %v248
    %250 = vmatpush.msra.mxu0 %v249
    %v251 = vand.u32 %v89, 4294901760
    %v252 = vsub.f32 %v89, %v251
    %253 = vmatpush.msra.mxu0 %v252
    %v254 = vand.u32 %v87, 4294901760
    %v255 = vsub.f32 %v87, %v254
    %256 = vmatpush.msra.mxu0 %v255
    %v257 = vand.u32 %v85, 4294901760
    %v258 = vsub.f32 %v85, %v257
    %259 = vmatpush.msra.mxu0 %v258
    %v260 = vand.u32 %v83, 4294901760
    %v261 = vsub.f32 %v83, %v260
    %262 = vmatpush.msra.mxu0 %v261
    %v263 = vand.u32 %v81, 4294901760
    %v264 = vsub.f32 %v81, %v263
    %265 = vmatpush.msra.mxu0 %v264
    %v266 = vand.u32 %v79, 4294901760
    %v267 = vsub.f32 %v79, %v266
    %268 = vmatpush.msra.mxu0 %v267
    %v269 = vand.u32 %v77, 4294901760
    %v270 = vsub.f32 %v77, %v269
    %271 = vmatpush.msra.mxu0 %v270
    %v272 = vand.u32 %v75, 4294901760
    %v273 = vsub.f32 %v75, %v272
    %274 = vmatpush.msra.mxu0 %v273
    %v275 = vand.u32 %v73, 4294901760
    %v276 = vsub.f32 %v73, %v275
    %277 = vmatpush.msra.mxu0 %v276
    %v278 = vand.u32 %v71, 4294901760
    %v279 = vsub.f32 %v71, %v278
    %280 = vmatpush.msra.mxu0 %v279
    %v281 = vand.u32 %v69, 4294901760
    %v282 = vsub.f32 %v69, %v281
    %283 = vmatpush.msra.mxu0 %v282
    %v284 = vand.u32 %v67, 4294901760
    %v285 = vsub.f32 %v67, %v284
    %286 = vmatpush.msra.mxu0 %v285
    %v287 = vand.u32 %v65, 4294901760
    %v288 = vsub.f32 %v65, %v287
    %289 = vmatpush.msra.mxu0 %v288
    %v290 = vand.u32 %v63, 4294901760
    %v291 = vsub.f32 %v63, %v290
    %292 = vmatpush.msra.mxu0 %v291
    %v293 = vand.u32 %v61, 4294901760
    %v294 = vsub.f32 %v61, %v293
    %295 = vmatpush.msra.mxu0 %v294
    %v296 = vand.u32 %v59, 4294901760
    %v297 = vsub.f32 %v59, %v296
    %298 = vmatmul.f32.gmra.mxu0 %v297
    %v299 = vpop.f32.mrf.mxu0
    %v300 = vadd.f32 %v242, %v299
    %v301 = vand.u32 %v60, 4294901760
    %v302 = vsub.f32 %v60, %v301
    %303 = vmatmul.f32.gmra.mxu0 %v302
    %v304 = vpop.f32.mrf.mxu0
    %v305 = vadd.f32 %v246, %v304
    %306 = vdwg.mxu0
    %v307 = vand.u32 %v91, 4294901760
    %308 = vmatpush.msra.mxu0 %v307
    %v309 = vand.u32 %v89, 4294901760
    %310 = vmatpush.msra.mxu0 %v309
    %v311 = vand.u32 %v87, 4294901760
    %312 = vmatpush.msra.mxu0 %v311
    %v313 = vand.u32 %v85, 4294901760
    %314 = vmatpush.msra.mxu0 %v313
    %v315 = vand.u32 %v83, 4294901760
    %316 = vmatpush.msra.mxu0 %v315
    %v317 = vand.u32 %v81, 4294901760
    %318 = vmatpush.msra.mxu0 %v317
    %v319 = vand.u32 %v79, 4294901760
    %320 = vmatpush.msra.mxu0 %v319
    %v321 = vand.u32 %v77, 4294901760
    %322 = vmatpush.msra.mxu0 %v321
    %v323 = vand.u32 %v75, 4294901760
    %324 = vmatpush.msra.mxu0 %v323
    %v325 = vand.u32 %v73, 4294901760
    %326 = vmatpush.msra.mxu0 %v325
    %v327 = vand.u32 %v71, 4294901760
    %328 = vmatpush.msra.mxu0 %v327
    %v329 = vand.u32 %v69, 4294901760
    %330 = vmatpush.msra.mxu0 %v329
    %v331 = vand.u32 %v67, 4294901760
    %332 = vmatpush.msra.mxu0 %v331
    %v333 = vand.u32 %v65, 4294901760
    %334 = vmatpush.msra.mxu0 %v333
    %v335 = vand.u32 %v63, 4294901760
    %336 = vmatpush.msra.mxu0 %v335
    %v337 = vand.u32 %v61, 4294901760
    %338 = vmatpush.msra.mxu0 %v337
    %v339 = vand.u32 %v59, 4294901760
    %v340 = vsub.f32 %v59, %v339
    %v341 = vand.u32 %v340, 4294901760
    %342 = vmatmul.f32.gmra.mxu0 %v341
    %v343 = vpop.f32.mrf.mxu0
    %v344 = vadd.f32 %v300, %v343
    %v345 = vand.u32 %v60, 4294901760
    %v346 = vsub.f32 %v60, %v345
    %v347 = vand.u32 %v346, 4294901760
    %348 = vmatmul.f32.gmra.mxu0 %v347
    %v349 = vpop.f32.mrf.mxu0
    %v350 = vadd.f32 %v305, %v349
    %351 = vdwg.mxu0
    %v352 = vand.u32 %v91, 4294901760
    %v353 = vsub.f32 %v91, %v352
    %v354 = vand.u32 %v353, 4294901760
    %355 = vmatpush.msra.mxu0 %v354
    %v356 = vand.u32 %v89, 4294901760
    %v357 = vsub.f32 %v89, %v356
    %v358 = vand.u32 %v357, 4294901760
    %359 = vmatpush.msra.mxu0 %v358
    %v360 = vand.u32 %v87, 4294901760
    %v361 = vsub.f32 %v87, %v360
    %v362 = vand.u32 %v361, 4294901760
    %363 = vmatpush.msra.mxu0 %v362
    %v364 = vand.u32 %v85, 4294901760
    %v365 = vsub.f32 %v85, %v364
    %v366 = vand.u32 %v365, 4294901760
    %367 = vmatpush.msra.mxu0 %v366
    %v368 = vand.u32 %v83, 4294901760
    %v369 = vsub.f32 %v83, %v368
    %v370 = vand.u32 %v369, 4294901760
    %371 = vmatpush.msra.mxu0 %v370
    %v372 = vand.u32 %v81, 4294901760
    %v373 = vsub.f32 %v81, %v372
    %v374 = vand.u32 %v373, 4294901760
    %375 = vmatpush.msra.mxu0 %v374
    %v376 = vand.u32 %v79, 4294901760
    %v377 = vsub.f32 %v79, %v376
    %v378 = vand.u32 %v377, 4294901760
    %379 = vmatpush.msra.mxu0 %v378
    %v380 = vand.u32 %v77, 4294901760
    %v381 = vsub.f32 %v77, %v380
    %v382 = vand.u32 %v381, 4294901760
    %383 = vmatpush.msra.mxu0 %v382
    %v384 = vand.u32 %v75, 4294901760
    %v385 = vsub.f32 %v75, %v384
    %v386 = vand.u32 %v385, 4294901760
    %387 = vmatpush.msra.mxu0 %v386
    %v388 = vand.u32 %v73, 4294901760
    %v389 = vsub.f32 %v73, %v388
    %v390 = vand.u32 %v389, 4294901760
    %391 = vmatpush.msra.mxu0 %v390
    %v392 = vand.u32 %v71, 4294901760
    %v393 = vsub.f32 %v71, %v392
    %v394 = vand.u32 %v393, 4294901760
    %395 = vmatpush.msra.mxu0 %v394
    %v396 = vand.u32 %v69, 4294901760
    %v397 = vsub.f32 %v69, %v396
    %v398 = vand.u32 %v397, 4294901760
    %399 = vmatpush.msra.mxu0 %v398
    %v400 = vand.u32 %v67, 4294901760
    %v401 = vsub.f32 %v67, %v400
    %v402 = vand.u32 %v401, 4294901760
    %403 = vmatpush.msra.mxu0 %v402
    %v404 = vand.u32 %v65, 4294901760
    %v405 = vsub.f32 %v65, %v404
    %v406 = vand.u32 %v405, 4294901760
    %407 = vmatpush.msra.mxu0 %v406
    %v408 = vand.u32 %v63, 4294901760
    %v409 = vsub.f32 %v63, %v408
    %v410 = vand.u32 %v409, 4294901760
    %411 = vmatpush.msra.mxu0 %v410
    %v412 = vand.u32 %v61, 4294901760
    %v413 = vsub.f32 %v61, %v412
    %v414 = vand.u32 %v413, 4294901760
    %415 = vmatpush.msra.mxu0 %v414
    %v416 = vand.u32 %v59, 4294901760
    %417 = vmatmul.f32.gmra.mxu0 %v416
    %v418 = vpop.f32.mrf.mxu0
    %v419 = vadd.f32 %v344, %v418
    %v420 = vand.u32 %v60, 4294901760
    %421 = vmatmul.f32.gmra.mxu0 %v420
    %v422 = vpop.f32.mrf.mxu0
    %v423 = vadd.f32 %v350, %v422
    %424 = vdwg.mxu0
    %v425 = vand.u32 %v91, 4294901760
    %426 = vmatpush.msra.mxu0 %v425
    %v427 = vand.u32 %v89, 4294901760
    %428 = vmatpush.msra.mxu0 %v427
    %v429 = vand.u32 %v87, 4294901760
    %430 = vmatpush.msra.mxu0 %v429
    %v431 = vand.u32 %v85, 4294901760
    %432 = vmatpush.msra.mxu0 %v431
    %v433 = vand.u32 %v83, 4294901760
    %434 = vmatpush.msra.mxu0 %v433
    %v435 = vand.u32 %v81, 4294901760
    %436 = vmatpush.msra.mxu0 %v435
    %v437 = vand.u32 %v79, 4294901760
    %438 = vmatpush.msra.mxu0 %v437
    %v439 = vand.u32 %v77, 4294901760
    %440 = vmatpush.msra.mxu0 %v439
    %v441 = vand.u32 %v75, 4294901760
    %442 = vmatpush.msra.mxu0 %v441
    %v443 = vand.u32 %v73, 4294901760
    %444 = vmatpush.msra.mxu0 %v443
    %v445 = vand.u32 %v71, 4294901760
    %446 = vmatpush.msra.mxu0 %v445
    %v447 = vand.u32 %v69, 4294901760
    %448 = vmatpush.msra.mxu0 %v447
    %v449 = vand.u32 %v67, 4294901760
    %450 = vmatpush.msra.mxu0 %v449
    %v451 = vand.u32 %v65, 4294901760
    %452 = vmatpush.msra.mxu0 %v451
    %v453 = vand.u32 %v63, 4294901760
    %454 = vmatpush.msra.mxu0 %v453
    %v455 = vand.u32 %v61, 4294901760
    %456 = vmatpush.msra.mxu0 %v455
    %v457 = vand.u32 %v59, 4294901760
    %458 = vmatmul.f32.gmra.mxu0 %v457
    %v459 = vpop.f32.mrf.mxu0
    %v460 = vadd.f32 %v419, %v459
    %v461 = vand.u32 %v60, 4294901760
    %462 = vmatmul.f32.gmra.mxu0 %v461
    %v463 = vpop.f32.mrf.mxu0
    %v464 = vadd.f32 %v423, %v463
    %465 = vdwg.mxu0
    %v466 = vand.u32 %v92, 4294901760
    %467 = vmatpush.msra.mxu0 %v466
    %v468 = vand.u32 %v90, 4294901760
    %469 = vmatpush.msra.mxu0 %v468
    %v470 = vand.u32 %v88, 4294901760
    %471 = vmatpush.msra.mxu0 %v470
    %v472 = vand.u32 %v86, 4294901760
    %473 = vmatpush.msra.mxu0 %v472
    %v474 = vand.u32 %v84, 4294901760
    %475 = vmatpush.msra.mxu0 %v474
    %v476 = vand.u32 %v82, 4294901760
    %477 = vmatpush.msra.mxu0 %v476
    %v478 = vand.u32 %v80, 4294901760
    %479 = vmatpush.msra.mxu0 %v478
    %v480 = vand.u32 %v78, 4294901760
    %481 = vmatpush.msra.mxu0 %v480
    %v482 = vand.u32 %v76, 4294901760
    %483 = vmatpush.msra.mxu0 %v482
    %v484 = vand.u32 %v74, 4294901760
    %485 = vmatpush.msra.mxu0 %v484
    %v486 = vand.u32 %v72, 4294901760
    %487 = vmatpush.msra.mxu0 %v486
    %v488 = vand.u32 %v70, 4294901760
    %489 = vmatpush.msra.mxu0 %v488
    %v490 = vand.u32 %v68, 4294901760
    %491 = vmatpush.msra.mxu0 %v490
    %v492 = vand.u32 %v66, 4294901760
    %493 = vmatpush.msra.mxu0 %v492
    %v494 = vand.u32 %v64, 4294901760
    %495 = vmatpush.msra.mxu0 %v494
    %v496 = vand.u32 %v62, 4294901760
    %497 = vmatpush.msra.mxu0 %v496
    %v498 = vand.u32 %v59, 4294901760
    %v499 = vsub.f32 %v59, %v498
    %v500 = vand.u32 %v499, 4294901760
    %v501 = vsub.f32 %v499, %v500
    %v502 = vand.u32 %v501, 4294901760
    %503 = vmatmul.f32.gmra.mxu0 %v502
    %v504 = vpop.f32.mrf.mxu0
    %v505 = vadd.f32 0.0, %v504
    %v506 = vand.u32 %v60, 4294901760
    %v507 = vsub.f32 %v60, %v506
    %v508 = vand.u32 %v507, 4294901760
    %v509 = vsub.f32 %v507, %v508
    %v510 = vand.u32 %v509, 4294901760
    %511 = vmatmul.f32.gmra.mxu0 %v510
    %v512 = vpop.f32.mrf.mxu0
    %v513 = vadd.f32 0.0, %v512
    %514 = vdwg.mxu0
    %v515 = vand.u32 %v92, 4294901760
    %v516 = vsub.f32 %v92, %v515
    %v517 = vand.u32 %v516, 4294901760
    %v518 = vsub.f32 %v516, %v517
    %v519 = vand.u32 %v518, 4294901760
    %520 = vmatpush.msra.mxu0 %v519
    %v521 = vand.u32 %v90, 4294901760
    %v522 = vsub.f32 %v90, %v521
    %v523 = vand.u32 %v522, 4294901760
    %v524 = vsub.f32 %v522, %v523
    %v525 = vand.u32 %v524, 4294901760
    %526 = vmatpush.msra.mxu0 %v525
    %v527 = vand.u32 %v88, 4294901760
    %v528 = vsub.f32 %v88, %v527
    %v529 = vand.u32 %v528, 4294901760
    %v530 = vsub.f32 %v528, %v529
    %v531 = vand.u32 %v530, 4294901760
    %532 = vmatpush.msra.mxu0 %v531
    %v533 = vand.u32 %v86, 4294901760
    %v534 = vsub.f32 %v86, %v533
    %v535 = vand.u32 %v534, 4294901760
    %v536 = vsub.f32 %v534, %v535
    %v537 = vand.u32 %v536, 4294901760
    %538 = vmatpush.msra.mxu0 %v537
    %v539 = vand.u32 %v84, 4294901760
    %v540 = vsub.f32 %v84, %v539
    %v541 = vand.u32 %v540, 4294901760
    %v542 = vsub.f32 %v540, %v541
    %v543 = vand.u32 %v542, 4294901760
    %544 = vmatpush.msra.mxu0 %v543
    %v545 = vand.u32 %v82, 4294901760
    %v546 = vsub.f32 %v82, %v545
    %v547 = vand.u32 %v546, 4294901760
    %v548 = vsub.f32 %v546, %v547
    %v549 = vand.u32 %v548, 4294901760
    %550 = vmatpush.msra.mxu0 %v549
    %v551 = vand.u32 %v80, 4294901760
    %v552 = vsub.f32 %v80, %v551
    %v553 = vand.u32 %v552, 4294901760
    %v554 = vsub.f32 %v552, %v553
    %v555 = vand.u32 %v554, 4294901760
    %556 = vmatpush.msra.mxu0 %v555
    %v557 = vand.u32 %v78, 4294901760
    %v558 = vsub.f32 %v78, %v557
    %v559 = vand.u32 %v558, 4294901760
    %v560 = vsub.f32 %v558, %v559
    %v561 = vand.u32 %v560, 4294901760
    %562 = vmatpush.msra.mxu0 %v561
    %v563 = vand.u32 %v76, 4294901760
    %v564 = vsub.f32 %v76, %v563
    %v565 = vand.u32 %v564, 4294901760
    %v566 = vsub.f32 %v564, %v565
    %v567 = vand.u32 %v566, 4294901760
    %568 = vmatpush.msra.mxu0 %v567
    %v569 = vand.u32 %v74, 4294901760
    %v570 = vsub.f32 %v74, %v569
    %v571 = vand.u32 %v570, 4294901760
    %v572 = vsub.f32 %v570, %v571
    %v573 = vand.u32 %v572, 4294901760
    %574 = vmatpush.msra.mxu0 %v573
    %v575 = vand.u32 %v72, 4294901760
    %v576 = vsub.f32 %v72, %v575
    %v577 = vand.u32 %v576, 4294901760
    %v578 = vsub.f32 %v576, %v577
    %v579 = vand.u32 %v578, 4294901760
    %580 = vmatpush.msra.mxu0 %v579
    %v581 = vand.u32 %v70, 4294901760
    %v582 = vsub.f32 %v70, %v581
    %v583 = vand.u32 %v582, 4294901760
    %v584 = vsub.f32 %v582, %v583
    %v585 = vand.u32 %v584, 4294901760
    %586 = vmatpush.msra.mxu0 %v585
    %v587 = vand.u32 %v68, 4294901760
    %v588 = vsub.f32 %v68, %v587
    %v589 = vand.u32 %v588, 4294901760
    %v590 = vsub.f32 %v588, %v589
    %v591 = vand.u32 %v590, 4294901760
    %592 = vmatpush.msra.mxu0 %v591
    %v593 = vand.u32 %v66, 4294901760
    %v594 = vsub.f32 %v66, %v593
    %v595 = vand.u32 %v594, 4294901760
    %v596 = vsub.f32 %v594, %v595
    %v597 = vand.u32 %v596, 4294901760
    %598 = vmatpush.msra.mxu0 %v597
    %v599 = vand.u32 %v64, 4294901760
    %v600 = vsub.f32 %v64, %v599
    %v601 = vand.u32 %v600, 4294901760
    %v602 = vsub.f32 %v600, %v601
    %v603 = vand.u32 %v602, 4294901760
    %604 = vmatpush.msra.mxu0 %v603
    %v605 = vand.u32 %v62, 4294901760
    %v606 = vsub.f32 %v62, %v605
    %v607 = vand.u32 %v606, 4294901760
    %v608 = vsub.f32 %v606, %v607
    %v609 = vand.u32 %v608, 4294901760
    %610 = vmatpush.msra.mxu0 %v609
    %v611 = vand.u32 %v59, 4294901760
    %612 = vmatmul.f32.gmra.mxu0 %v611
    %v613 = vpop.f32.mrf.mxu0
    %v614 = vadd.f32 %v505, %v613
    %v615 = vand.u32 %v60, 4294901760
    %616 = vmatmul.f32.gmra.mxu0 %v615
    %v617 = vpop.f32.mrf.mxu0
    %v618 = vadd.f32 %v513, %v617
    %619 = vdwg.mxu0
    %v620 = vand.u32 %v92, 4294901760
    %v621 = vsub.f32 %v92, %v620
    %622 = vmatpush.msra.mxu0 %v621
    %v623 = vand.u32 %v90, 4294901760
    %v624 = vsub.f32 %v90, %v623
    %625 = vmatpush.msra.mxu0 %v624
    %v626 = vand.u32 %v88, 4294901760
    %v627 = vsub.f32 %v88, %v626
    %628 = vmatpush.msra.mxu0 %v627
    %v629 = vand.u32 %v86, 4294901760
    %v630 = vsub.f32 %v86, %v629
    %631 = vmatpush.msra.mxu0 %v630
    %v632 = vand.u32 %v84, 4294901760
    %v633 = vsub.f32 %v84, %v632
    %634 = vmatpush.msra.mxu0 %v633
    %v635 = vand.u32 %v82, 4294901760
    %v636 = vsub.f32 %v82, %v635
    %637 = vmatpush.msra.mxu0 %v636
    %v638 = vand.u32 %v80, 4294901760
    %v639 = vsub.f32 %v80, %v638
    %640 = vmatpush.msra.mxu0 %v639
    %v641 = vand.u32 %v78, 4294901760
    %v642 = vsub.f32 %v78, %v641
    %643 = vmatpush.msra.mxu0 %v642
    %v644 = vand.u32 %v76, 4294901760
    %v645 = vsub.f32 %v76, %v644
    %646 = vmatpush.msra.mxu0 %v645
    %v647 = vand.u32 %v74, 4294901760
    %v648 = vsub.f32 %v74, %v647
    %649 = vmatpush.msra.mxu0 %v648
    %v650 = vand.u32 %v72, 4294901760
    %v651 = vsub.f32 %v72, %v650
    %652 = vmatpush.msra.mxu0 %v651
    %v653 = vand.u32 %v70, 4294901760
    %v654 = vsub.f32 %v70, %v653
    %655 = vmatpush.msra.mxu0 %v654
    %v656 = vand.u32 %v68, 4294901760
    %v657 = vsub.f32 %v68, %v656
    %658 = vmatpush.msra.mxu0 %v657
    %v659 = vand.u32 %v66, 4294901760
    %v660 = vsub.f32 %v66, %v659
    %661 = vmatpush.msra.mxu0 %v660
    %v662 = vand.u32 %v64, 4294901760
    %v663 = vsub.f32 %v64, %v662
    %664 = vmatpush.msra.mxu0 %v663
    %v665 = vand.u32 %v62, 4294901760
    %v666 = vsub.f32 %v62, %v665
    %667 = vmatpush.msra.mxu0 %v666
    %v668 = vand.u32 %v59, 4294901760
    %v669 = vsub.f32 %v59, %v668
    %670 = vmatmul.f32.gmra.mxu0 %v669
    %v671 = vpop.f32.mrf.mxu0
    %v672 = vadd.f32 %v614, %v671
    %v673 = vand.u32 %v60, 4294901760
    %v674 = vsub.f32 %v60, %v673
    %675 = vmatmul.f32.gmra.mxu0 %v674
    %v676 = vpop.f32.mrf.mxu0
    %v677 = vadd.f32 %v618, %v676
    %678 = vdwg.mxu0
    %v679 = vand.u32 %v92, 4294901760
    %680 = vmatpush.msra.mxu0 %v679
    %v681 = vand.u32 %v90, 4294901760
    %682 = vmatpush.msra.mxu0 %v681
    %v683 = vand.u32 %v88, 4294901760
    %684 = vmatpush.msra.mxu0 %v683
    %v685 = vand.u32 %v86, 4294901760
    %686 = vmatpush.msra.mxu0 %v685
    %v687 = vand.u32 %v84, 4294901760
    %688 = vmatpush.msra.mxu0 %v687
    %v689 = vand.u32 %v82, 4294901760
    %690 = vmatpush.msra.mxu0 %v689
    %v691 = vand.u32 %v80, 4294901760
    %692 = vmatpush.msra.mxu0 %v691
    %v693 = vand.u32 %v78, 4294901760
    %694 = vmatpush.msra.mxu0 %v693
    %v695 = vand.u32 %v76, 4294901760
    %696 = vmatpush.msra.mxu0 %v695
    %v697 = vand.u32 %v74, 4294901760
    %698 = vmatpush.msra.mxu0 %v697
    %v699 = vand.u32 %v72, 4294901760
    %700 = vmatpush.msra.mxu0 %v699
    %v701 = vand.u32 %v70, 4294901760
    %702 = vmatpush.msra.mxu0 %v701
    %v703 = vand.u32 %v68, 4294901760
    %704 = vmatpush.msra.mxu0 %v703
    %v705 = vand.u32 %v66, 4294901760
    %706 = vmatpush.msra.mxu0 %v705
    %v707 = vand.u32 %v64, 4294901760
    %708 = vmatpush.msra.mxu0 %v707
    %v709 = vand.u32 %v62, 4294901760
    %710 = vmatpush.msra.mxu0 %v709
    %v711 = vand.u32 %v59, 4294901760
    %v712 = vsub.f32 %v59, %v711
    %v713 = vand.u32 %v712, 4294901760
    %714 = vmatmul.f32.gmra.mxu0 %v713
    %v715 = vpop.f32.mrf.mxu0
    %v716 = vadd.f32 %v672, %v715
    %v717 = vand.u32 %v60, 4294901760
    %v718 = vsub.f32 %v60, %v717
    %v719 = vand.u32 %v718, 4294901760
    %720 = vmatmul.f32.gmra.mxu0 %v719
    %v721 = vpop.f32.mrf.mxu0
    %v722 = vadd.f32 %v677, %v721
    %723 = vdwg.mxu0
    %v724 = vand.u32 %v92, 4294901760
    %v725 = vsub.f32 %v92, %v724
    %v726 = vand.u32 %v725, 4294901760
    %727 = vmatpush.msra.mxu0 %v726
    %v728 = vand.u32 %v90, 4294901760
    %v729 = vsub.f32 %v90, %v728
    %v730 = vand.u32 %v729, 4294901760
    %731 = vmatpush.msra.mxu0 %v730
    %v732 = vand.u32 %v88, 4294901760
    %v733 = vsub.f32 %v88, %v732
    %v734 = vand.u32 %v733, 4294901760
    %735 = vmatpush.msra.mxu0 %v734
    %v736 = vand.u32 %v86, 4294901760
    %v737 = vsub.f32 %v86, %v736
    %v738 = vand.u32 %v737, 4294901760
    %739 = vmatpush.msra.mxu0 %v738
    %v740 = vand.u32 %v84, 4294901760
    %v741 = vsub.f32 %v84, %v740
    %v742 = vand.u32 %v741, 4294901760
    %743 = vmatpush.msra.mxu0 %v742
    %v744 = vand.u32 %v82, 4294901760
    %v745 = vsub.f32 %v82, %v744
    %v746 = vand.u32 %v745, 4294901760
    %747 = vmatpush.msra.mxu0 %v746
    %v748 = vand.u32 %v80, 4294901760
    %v749 = vsub.f32 %v80, %v748
    %v750 = vand.u32 %v749, 4294901760
    %751 = vmatpush.msra.mxu0 %v750
    %v752 = vand.u32 %v78, 4294901760
    %v753 = vsub.f32 %v78, %v752
    %v754 = vand.u32 %v753, 4294901760
    %755 = vmatpush.msra.mxu0 %v754
    %v756 = vand.u32 %v76, 4294901760
    %v757 = vsub.f32 %v76, %v756
    %v758 = vand.u32 %v757, 4294901760
    %759 = vmatpush.msra.mxu0 %v758
    %v760 = vand.u32 %v74, 4294901760
    %v761 = vsub.f32 %v74, %v760
    %v762 = vand.u32 %v761, 4294901760
    %763 = vmatpush.msra.mxu0 %v762
    %v764 = vand.u32 %v72, 4294901760
    %v765 = vsub.f32 %v72, %v764
    %v766 = vand.u32 %v765, 4294901760
    %767 = vmatpush.msra.mxu0 %v766
    %v768 = vand.u32 %v70, 4294901760
    %v769 = vsub.f32 %v70, %v768
    %v770 = vand.u32 %v769, 4294901760
    %771 = vmatpush.msra.mxu0 %v770
    %v772 = vand.u32 %v68, 4294901760
    %v773 = vsub.f32 %v68, %v772
    %v774 = vand.u32 %v773, 4294901760
    %775 = vmatpush.msra.mxu0 %v774
    %v776 = vand.u32 %v66, 4294901760
    %v777 = vsub.f32 %v66, %v776
    %v778 = vand.u32 %v777, 4294901760
    %779 = vmatpush.msra.mxu0 %v778
    %v780 = vand.u32 %v64, 4294901760
    %v781 = vsub.f32 %v64, %v780
    %v782 = vand.u32 %v781, 4294901760
    %783 = vmatpush.msra.mxu0 %v782
    %v784 = vand.u32 %v62, 4294901760
    %v785 = vsub.f32 %v62, %v784
    %v786 = vand.u32 %v785, 4294901760
    %787 = vmatpush.msra.mxu0 %v786
    %v788 = vand.u32 %v59, 4294901760
    %789 = vmatmul.f32.gmra.mxu0 %v788
    %v790 = vpop.f32.mrf.mxu0
    %v791 = vadd.f32 %v716, %v790
    %v792 = vand.u32 %v60, 4294901760
    %793 = vmatmul.f32.gmra.mxu0 %v792
    %v794 = vpop.f32.mrf.mxu0
    %v795 = vadd.f32 %v722, %v794
    %796 = vdwg.mxu0
    %v797 = vand.u32 %v92, 4294901760
    %798 = vmatpush.msra.mxu0 %v797
    %v799 = vand.u32 %v90, 4294901760
    %800 = vmatpush.msra.mxu0 %v799
    %v801 = vand.u32 %v88, 4294901760
    %802 = vmatpush.msra.mxu0 %v801
    %v803 = vand.u32 %v86, 4294901760
    %804 = vmatpush.msra.mxu0 %v803
    %v805 = vand.u32 %v84, 4294901760
    %806 = vmatpush.msra.mxu0 %v805
    %v807 = vand.u32 %v82, 4294901760
    %808 = vmatpush.msra.mxu0 %v807
    %v809 = vand.u32 %v80, 4294901760
    %810 = vmatpush.msra.mxu0 %v809
    %v811 = vand.u32 %v78, 4294901760
    %812 = vmatpush.msra.mxu0 %v811
    %v813 = vand.u32 %v76, 4294901760
    %814 = vmatpush.msra.mxu0 %v813
    %v815 = vand.u32 %v74, 4294901760
    %816 = vmatpush.msra.mxu0 %v815
    %v817 = vand.u32 %v72, 4294901760
    %818 = vmatpush.msra.mxu0 %v817
    %v819 = vand.u32 %v70, 4294901760
    %820 = vmatpush.msra.mxu0 %v819
    %v821 = vand.u32 %v68, 4294901760
    %822 = vmatpush.msra.mxu0 %v821
    %v823 = vand.u32 %v66, 4294901760
    %824 = vmatpush.msra.mxu0 %v823
    %v825 = vand.u32 %v64, 4294901760
    %826 = vmatpush.msra.mxu0 %v825
    %v827 = vand.u32 %v62, 4294901760
    %828 = vmatpush.msra.mxu0 %v827
    %v829 = vand.u32 %v59, 4294901760
    %830 = vmatmul.f32.gmra.mxu0 %v829
    %v831 = vpop.f32.mrf.mxu0
    %v832 = vadd.f32 %v791, %v831
    %v833 = vand.u32 %v60, 4294901760
    %834 = vmatmul.f32.gmra.mxu0 %v833
    %v835 = vpop.f32.mrf.mxu0
    %v836 = vadd.f32 %v795, %v835
    %837 = vdwg.mxu0
    %838 = vmax.xlane.f32.xlu0 %v460
    %v839 = vpop.xlane.xlu0 %838
    %840 = vmax.xlane.f32.xlu0 %v464
    %v841 = vpop.xlane.xlu0 %840
    %v842 = vsub.f32 %v460, %v839
    %v843 = vsub.f32 %v464, %v841
    %v844 = vmul.f32 %v842, 1.442695
    %v845 = vpow.pop %v844
    %v846 = vmul.f32 %v843, 1.442695
    %v847 = vpow.pop %v846
    %848 = vadd.xlane.f32.xlu0 %v845
    %v849 = vpop.xlane.xlu0 %848
    %850 = vadd.xlane.f32.xlu0 %v847
    %v851 = vpop.xlane.xlu0 %850
    %v852 = vperm.slane %v93, 0
    %v853 = vmul.f32 %v845, %v852
    %v854 = vmul.f32 %v847, %v852
    %855 = vadd.xlane.f32.xlu0 %v853
    %v856 = vpop.xlane.xlu0 %855
    %857 = vadd.xlane.f32.xlu0 %v854
    %v858 = vpop.xlane.xlu0 %857
    %v859 = vrcp.pop %v849
    %v860 = vmul.f32 %v849, %v859
    %v861 = vsub.f32 1.0, %v860
    %v862 = vmul.f32 %v859, %v861
    %v863 = vadd.f32 %v859, %v862
    %vm864 = vweird.f32 %v849
    %vm865 = vweird.f32 %v859
    %vm866 = vmor %vm864, %vm865
    %v867 = vsel %vm866, %v859, %v863
    %v868 = vand.u32 2147483647, %v849
    %vm869 = vcmp.eq.f32.partialorder %v868, 8.507059e+37
    %v870 = vand.u32 %v849, 2147483648
    %v871 = vor.u32 1.1754944e-38, %v870
    %v872 = vsel %vm869, %v871, %v867
    %v873 = vrcp.pop %v851
    %v874 = vmul.f32 %v851, %v873
    %v875 = vsub.f32 1.0, %v874
    %v876 = vmul.f32 %v873, %v875
    %v877 = vadd.f32 %v873, %v876
    %vm878 = vweird.f32 %v851
    %vm879 = vweird.f32 %v873
    %vm880 = vmor %vm878, %vm879
    %v881 = vsel %vm880, %v873, %v877
    %v882 = vand.u32 2147483647, %v851
    %vm883 = vcmp.eq.f32.partialorder %v882, 8.507059e+37
    %v884 = vand.u32 %v851, 2147483648
    %v885 = vor.u32 1.1754944e-38, %v884
    %v886 = vsel %vm883, %v885, %v881
    %v887 = vmul.f32 %v856, %v872
    %v888 = vmul.f32 %v858, %v886
    %vm889 = vcmask 7168
    %890 = vst.msk [vmem:[%s3] sm:$0xff] %vm889, %v887
    %891 = vst.msk [vmem:[%s3 + $0x8] sm:$0xff] %vm889, %v888
    %892 = vmax.xlane.f32.xlu0 %v832
    %v893 = vpop.xlane.xlu0 %892
    %894 = vmax.xlane.f32.xlu0 %v836
    %v895 = vpop.xlane.xlu0 %894
    %v896 = vsub.f32 %v832, %v893
    %v897 = vsub.f32 %v836, %v895
    %v898 = vmul.f32 %v896, 1.442695
    %v899 = vpow.pop %v898
    %v900 = vmul.f32 %v897, 1.442695
    %v901 = vpow.pop %v900
    %902 = vadd.xlane.f32.xlu0 %v899
    %v903 = vpop.xlane.xlu0 %902
    %904 = vadd.xlane.f32.xlu0 %v901
    %v905 = vpop.xlane.xlu0 %904
    %v906 = vperm.slane %v93, 1
    %v907 = vmul.f32 %v899, %v906
    %v908 = vmul.f32 %v901, %v906
    %909 = vadd.xlane.f32.xlu0 %v907
    %v910 = vpop.xlane.xlu0 %909
    %911 = vadd.xlane.f32.xlu0 %v908
    %v912 = vpop.xlane.xlu0 %911
    %v913 = vrcp.pop %v903
    %v914 = vmul.f32 %v903, %v913
    %v915 = vsub.f32 1.0, %v914
    %v916 = vmul.f32 %v913, %v915
    %v917 = vadd.f32 %v913, %v916
    %vm918 = vweird.f32 %v903
    %vm919 = vweird.f32 %v913
    %vm920 = vmor %vm918, %vm919
    %v921 = vsel %vm920, %v913, %v917
    %v922 = vand.u32 2147483647, %v903
    %vm923 = vcmp.eq.f32.partialorder %v922, 8.507059e+37
    %v924 = vand.u32 %v903, 2147483648
    %v925 = vor.u32 1.1754944e-38, %v924
    %v926 = vsel %vm923, %v925, %v921
    %v927 = vrcp.pop %v905
    %v928 = vmul.f32 %v905, %v927
    %v929 = vsub.f32 1.0, %v928
    %v930 = vmul.f32 %v927, %v929
    %v931 = vadd.f32 %v927, %v930
    %vm932 = vweird.f32 %v905
    %vm933 = vweird.f32 %v927
    %vm934 = vmor %vm932, %vm933
    %v935 = vsel %vm934, %v927, %v931
    %v936 = vand.u32 2147483647, %v905
    %vm937 = vcmp.eq.f32.partialorder %v936, 8.507059e+37
    %v938 = vand.u32 %v905, 2147483648
    %v939 = vor.u32 1.1754944e-38, %v938
    %v940 = vsel %vm937, %v939, %v935
    %v941 = vmul.f32 %v910, %v926
    %v942 = vmul.f32 %v912, %v940
    %vm943 = vcmask 15368
    %944 = vst.msk [vmem:[%s3] sm:$0xff] %vm943, %v941
    %945 = vst.msk [vmem:[%s3 + $0x8] sm:$0xff] %vm943, %v942
    // Predicated region
    $region26: #{tpu_custom_call.1} parent=1 // pred_check
      _
    $region27: #{tpu_custom_call.1} parent=1 // pred_check_branch
      %947 = sbr.rel (0) target = $region29
    $region28: #{tpu_custom_call.1} parent=1 // pred_region
      _
    $region29: #{tpu_custom_call.1} parent=1 // pred_fallthru
      _
    // Predicated region
    $region30: #{tpu_custom_call.1} parent=1 // pred_check
      _
    $region31: #{tpu_custom_call.1} parent=1 // pred_check_branch
      %949 = sbr.rel (0) target = $region33
    $region32: #{tpu_custom_call.1} parent=1 // pred_region
      _
    $region33: #{tpu_custom_call.1} parent=1 // pred_fallthru
      _
    %950 = vsyncpa [#allocation3], 1
    %951 = vsyncpa [#allocation5], 1

</llo_original>
